<compile_context>
chip_gen: v7x
topology: tpu7x:2x2x1
jax: 0.10.0
libtpu: 0.0.40
codegen_flags: <defaults>
</compile_context>

<pallas_src>
import functools

import jax
import jax.numpy as jnp
from jax.experimental import pallas as pl
from jax.experimental.pallas import tpu as pltpu

LRELU_SLOPE = 0.2      # nn.LeakyReLU(0.2, True)


# ---------------------------------------------------------------------------
# Kernel
# ---------------------------------------------------------------------------
def _critic_kernel(seed_ref,                       # scalar prefetch (SMEM)
                   x_ref, att_ref,
                   w1x_ref, w1a_ref, b1_ref,       # fc1 split into x / att blocks
                   w2_ref, b2_ref,                 # fc2
                   w3t_ref, b3_ref,                # fc3 as a (1, ndh) row + (1,1) bias
                   out_ref,
                   *, p, training):
    f32 = jnp.float32

    def mm(a, w_ref):
        # Cast activations to the weight dtype (bf16-friendly on the MXU),
        # accumulate in f32.
        return jnp.dot(a.astype(w_ref.dtype), w_ref[...], preferred_element_type=f32)

    def leaky(v):
        return jnp.where(v > 0, v, LRELU_SLOPE * v)

    if training and p > 0.0:
        # Stateless hash PRNG (pure jnp -> lowers on TPU and in interpret mode).
        # Mask depends only on (global row, column, seed, layer salt), so it is
        # deterministic and independent of the batch tiling.
        keep_prob = 1.0 - p
        thr = jnp.uint32(min(int(round(keep_prob * 4294967296.0)), 4294967295))
        scale = jnp.float32(1.0 / keep_prob)
        seed_u = seed_ref[0].astype(jnp.uint32)
        row0 = (pl.program_id(0) * x_ref.shape[0]).astype(jnp.uint32)

        def dropout(v, salt):
            r = jax.lax.broadcasted_iota(jnp.int32, v.shape, 0).astype(jnp.uint32) + row0
            c = jax.lax.broadcasted_iota(jnp.int32, v.shape, 1).astype(jnp.uint32)
            h32 = r * jnp.uint32(0x9E3779B1)
            h32 = h32 ^ (c * jnp.uint32(0x85EBCA77))
            h32 = h32 ^ (seed_u * jnp.uint32(0xC2B2AE3D) + jnp.uint32(salt))
            # murmur-style finalizer
            h32 = h32 ^ (h32 >> 16)
            h32 = h32 * jnp.uint32(0x7FEB352D)
            h32 = h32 ^ (h32 >> 15)
            h32 = h32 * jnp.uint32(0x846CA68B)
            h32 = h32 ^ (h32 >> 16)
            return jnp.where(h32 < thr, v * scale, jnp.float32(0.0))
    else:
        def dropout(v, salt):
            return v

    # fc1 on cat(x, att) -- concat eliminated by weight splitting.
    h = mm(x_ref[...], w1x_ref) + mm(att_ref[...], w1a_ref) + b1_ref[...]
    h = dropout(leaky(h), 0x01234567)

    # fc2
    h = mm(h, w2_ref) + b2_ref[...]
    h = dropout(leaky(h), 0x089ABCDE)

    # fc3, batch-on-lanes: (1, ndh) @ (ndh, tile_b) -> (1, tile_b).
    # Keeps the output block lane-dense and cuts HBM writeback 128x vs a
    # zero-padded (tile_b, 128) block.
    ht = jnp.transpose(h.astype(w3t_ref.dtype))                    # (ndh, tile_b)
    row = jnp.dot(w3t_ref[...], ht, preferred_element_type=f32) + b3_ref[...]
    out_ref[...] = row.reshape(out_ref.shape)


# ---------------------------------------------------------------------------
# One-time parameter preparation (transpose / split / cast)
# ---------------------------------------------------------------------------
def prepare_params(raw, *, res_size, weight_dtype=jnp.float32):
    """Convert torch-layout (out, in) Linear params into kernel layout, once."""
    w1 = jnp.transpose(raw["fc1_w"])               # (res+att, ndh)
    w1x, w1a = w1[:res_size], w1[res_size:]
    w2 = jnp.transpose(raw["fc2_w"])               # (ndh, ndh)

    return {
        "w1x": w1x.astype(weight_dtype),
        "w1a": w1a.astype(weight_dtype),
        "b1": raw["fc1_b"].reshape(1, -1).astype(jnp.float32),
        "w2": w2.astype(weight_dtype),
        "b2": raw["fc2_b"].reshape(1, -1).astype(jnp.float32),
        "w3t": raw["fc3_w"].astype(weight_dtype),   # (1, ndh) row vector
        "b3": raw["fc3_b"].reshape(1, 1).astype(jnp.float32),
    }


def _choose_tile(batch, tile_b):
    if tile_b is not None:
        assert tile_b % 8 == 0, "tile_b must be a multiple of 8 (sublane)"
        return tile_b
    b8 = -(-batch // 8) * 8
    # Small B: one tile (minimal per-grid-step overhead).  Large B: 1024-wide
    # tiles -> >= 2 tiles, so the "parallel" axis can shard across v7x's 2 TCs.
    return b8 if b8 <= 1024 else 1024


# ---------------------------------------------------------------------------
# Wrapper
# ---------------------------------------------------------------------------
def critic_forward(prepared, x, att, *, seed=0, training=False, p=0.5, tile_b=None):
    assert 0.0 <= p < 1.0
    B, res = x.shape
    atts = att.shape[-1]
    ndh = prepared["w2"].shape[0]

    tile_b = _choose_tile(B, tile_b)
    n_tiles = pl.cdiv(B, tile_b)

    seed_arr = jnp.asarray([seed], dtype=jnp.int32)

    row = lambda i, *_: (i, 0)        # batch-tiled operands
    const = lambda i, *_: (0, 0)      # resident weights / biases
    out_map = lambda i, *_: (i, 0, 0)

    weight_bytes = sum(int(v.nbytes) for v in prepared.values())
    flops = 2 * B * ndh * (res + atts + ndh + 1)
    bytes_accessed = int(x.nbytes + att.nbytes + weight_bytes + B * 4)
    cost = pl.CostEstimate(flops=flops, transcendentals=0,
                           bytes_accessed=bytes_accessed)

    # Actual footprint + headroom (double-buffered streamed blocks, resident
    # weights x2 buffers, generous slack for elementwise temporaries).
    stream_bytes = tile_b * (res * x.dtype.itemsize + atts * att.dtype.itemsize + 4)
    vmem_bytes = 2 * weight_bytes + 2 * stream_bytes + 8 * tile_b * ndh * 4
    vmem_limit = int(min(64 << 20, max(4 << 20, 2 * vmem_bytes)))

    grid_spec = pltpu.PrefetchScalarGridSpec(
        num_scalar_prefetch=1,
        grid=(n_tiles,),
        in_specs=[
            pl.BlockSpec((tile_b, res), row),
            pl.BlockSpec((tile_b, atts), row),
            pl.BlockSpec(prepared["w1x"].shape, const),
            pl.BlockSpec(prepared["w1a"].shape, const),
            pl.BlockSpec(prepared["b1"].shape, const),
            pl.BlockSpec(prepared["w2"].shape, const),
            pl.BlockSpec(prepared["b2"].shape, const),
            pl.BlockSpec(prepared["w3t"].shape, const),
            pl.BlockSpec(prepared["b3"].shape, const),
        ],
        out_specs=pl.BlockSpec((1, 1, tile_b), out_map),
    )

    kernel = functools.partial(_critic_kernel, p=float(p), training=bool(training))

    out = pl.pallas_call(
        kernel,
        out_shape=jax.ShapeDtypeStruct((n_tiles, 1, tile_b), jnp.float32),
        grid_spec=grid_spec,
        compiler_params=pltpu.CompilerParams(
            dimension_semantics=("parallel",),
            vmem_limit_bytes=vmem_limit,
        ),
        cost_estimate=cost,
    )(seed_arr, x, att,
      prepared["w1x"], prepared["w1a"], prepared["b1"],
      prepared["w2"], prepared["b2"],
      prepared["w3t"], prepared["b3"])

    # Flat (n_tiles * tile_b) vector; first B entries are the real scores.
    return out.reshape(n_tiles * tile_b)[:B].reshape(B, 1)


# ---------------------------------------------------------------------------
# Pure-JAX reference (eval mode: dropout is identity)
# ---------------------------------------------------------------------------
def critic_reference(raw, x, att):
    leaky = lambda v: jnp.where(v > 0, v, LRELU_SLOPE * v)
    h = jnp.concatenate([x, att], axis=1)
    h = leaky(h @ raw["fc1_w"].T + raw["fc1_b"])
    h = leaky(h @ raw["fc2_w"].T + raw["fc2_b"])
    return h @ raw["fc3_w"].T + raw["fc3_b"]


# ---------------------------------------------------------------------------
def init_raw_params(key, res_size, att_size, ndh):
    # weights_init: Linear weight ~ N(0, 0.02), bias = 0
    shapes = {
        "fc1_w": (ndh, res_size + att_size),
        "fc2_w": (ndh, ndh),
        "fc3_w": (1, ndh),
    }
    params = {}
    keys = jax.random.split(key, len(shapes))
    for k, (name, shp) in zip(keys, shapes.items()):
        params[name] = 0.02 * jax.random.normal(k, shp, dtype=jnp.float32)
        params[name.replace("_w", "_b")] = jnp.zeros((shp[0],), dtype=jnp.float32)
    return params


if __name__ == "__main__":
    RES, ATT, NDH, B = 64, 32, 128, 200   # opt.resSize, opt.attSize, opt.ndh, batch

    key = jax.random.PRNGKey(0)
    kp, kx, ka = jax.random.split(key, 3)
    raw = init_raw_params(kp, RES, ATT, NDH)

    x = jax.random.normal(kx, (B, RES), dtype=jnp.float32)
    att = jax.random.normal(ka, (B, ATT), dtype=jnp.float32)

    # --- eval mode, f32 weights: exact match vs pure-JAX reference ---
    prepared = prepare_params(raw, res_size=RES)
    out = jax.block_until_ready(critic_forward(prepared, x, att))
    ref = critic_reference(raw, x, att)
    assert out.shape == (B, 1)
    assert jnp.allclose(out, ref, rtol=1e-3, atol=1e-4), "f32 mismatch vs reference"

    # --- eval mode, bf16 weights (halves resident VMEM / weight DMA): loose tol ---
    prepared_bf16 = prepare_params(raw, res_size=RES, weight_dtype=jnp.bfloat16)
    out_bf = jax.block_until_ready(critic_forward(prepared_bf16, x, att))
    assert jnp.allclose(out_bf, ref, rtol=5e-2, atol=2e-2), "bf16 mismatch vs reference"

    # --- training mode: in-kernel dropout (p=0.5), deterministic given seed ---
    tr1 = jax.block_until_ready(
        critic_forward(prepared, x, att, seed=123, training=True))
    tr2 = jax.block_until_ready(
        critic_forward(prepared, x, att, seed=123, training=True))
    tr3 = jax.block_until_ready(
        critic_forward(prepared, x, att, seed=124, training=True))
    assert tr1.shape == (B, 1)
    assert bool(jnp.all(jnp.isfinite(tr1)))
    assert jnp.array_equal(tr1, tr2), "dropout not deterministic for fixed seed"
    assert not jnp.array_equal(tr1, tr3), "dropout ignores the seed"

    print("KERNEL_OK")
</pallas_src>

<mosaic_0001>
module attributes {stable_mosaic.version = 11 : i64} {
  func.func @_critic_kernel(%arg0: i32, %arg1: memref<1xi32, #tpu.memory_space<smem>>, %arg2: memref<200x64xf32, #tpu.memory_space<vmem>>, %arg3: memref<200x32xf32, #tpu.memory_space<vmem>>, %arg4: memref<64x128xf32, #tpu.memory_space<vmem>>, %arg5: memref<32x128xf32, #tpu.memory_space<vmem>>, %arg6: memref<1x128xf32, #tpu.memory_space<vmem>>, %arg7: memref<128x128xf32, #tpu.memory_space<vmem>>, %arg8: memref<1x128xf32, #tpu.memory_space<vmem>>, %arg9: memref<1x128xf32, #tpu.memory_space<vmem>>, %arg10: memref<1x1xf32, #tpu.memory_space<vmem>>, %arg11: memref<1x1x200xf32, #tpu.memory_space<vmem>>) attributes {dimension_semantics = [#tpu.dimension_semantics<parallel>], iteration_bounds = array<i64: 1>, scalar_prefetch = 1 : i64, scratch_operands = 0 : i64, tpu.core_type = #tpu.core_type<tc>, window_params = [{transform_indices = @transform_0, window_bounds = array<i64: 200, 64>}, {transform_indices = @transform_1, window_bounds = array<i64: 200, 32>}, {pipeline_mode = #tpu.pipeline_mode<synchronous>, transform_indices = @transform_2, window_bounds = array<i64: 64, 128>}, {pipeline_mode = #tpu.pipeline_mode<synchronous>, transform_indices = @transform_3, window_bounds = array<i64: 32, 128>}, {pipeline_mode = #tpu.pipeline_mode<synchronous>, transform_indices = @transform_4, window_bounds = array<i64: 1, 128>}, {pipeline_mode = #tpu.pipeline_mode<synchronous>, transform_indices = @transform_5, window_bounds = array<i64: 128, 128>}, {pipeline_mode = #tpu.pipeline_mode<synchronous>, transform_indices = @transform_6, window_bounds = array<i64: 1, 128>}, {pipeline_mode = #tpu.pipeline_mode<synchronous>, transform_indices = @transform_7, window_bounds = array<i64: 1, 128>}, {pipeline_mode = #tpu.pipeline_mode<synchronous>, transform_indices = @transform_8, window_bounds = array<i64: 1, 1>}, {transform_indices = @transform_9, window_bounds = array<i64: 1, 1, 200>}]} {
    %c0 = arith.constant 0 : index
    %c0_0 = arith.constant 0 : index
    %0 = vector.load %arg2[%c0, %c0_0] : memref<200x64xf32, #tpu.memory_space<vmem>>, vector<200x64xf32>
    %c0_1 = arith.constant 0 : index
    %c0_2 = arith.constant 0 : index
    %1 = vector.load %arg4[%c0_1, %c0_2] : memref<64x128xf32, #tpu.memory_space<vmem>>, vector<64x128xf32>
    %cst = arith.constant dense<0.000000e+00> : vector<200x128xf32>
    %2 = tpu.matmul %0, %1, %cst {dimension_numbers = #tpu.dot_dimension_numbers<[1], [0], [0], [1], [0, 0, 1, 1], [], []>} : vector<200x64xf32>, vector<64x128xf32>, vector<200x128xf32> -> vector<200x128xf32>
    %c0_3 = arith.constant 0 : index
    %c0_4 = arith.constant 0 : index
    %3 = vector.load %arg3[%c0_3, %c0_4] : memref<200x32xf32, #tpu.memory_space<vmem>>, vector<200x32xf32>
    %c0_5 = arith.constant 0 : index
    %c0_6 = arith.constant 0 : index
    %4 = vector.load %arg5[%c0_5, %c0_6] : memref<32x128xf32, #tpu.memory_space<vmem>>, vector<32x128xf32>
    %cst_7 = arith.constant dense<0.000000e+00> : vector<200x128xf32>
    %5 = tpu.matmul %3, %4, %cst_7 {dimension_numbers = #tpu.dot_dimension_numbers<[1], [0], [0], [1], [0, 0, 1, 1], [], []>} : vector<200x32xf32>, vector<32x128xf32>, vector<200x128xf32> -> vector<200x128xf32>
    %6 = arith.addf %2, %5 : vector<200x128xf32>
    %c0_8 = arith.constant 0 : index
    %c0_9 = arith.constant 0 : index
    %7 = vector.load %arg6[%c0_8, %c0_9] : memref<1x128xf32, #tpu.memory_space<vmem>>, vector<1x128xf32>
    %8 = vector.broadcast %7 : vector<1x128xf32> to vector<200x128xf32>
    %9 = arith.addf %6, %8 : vector<200x128xf32>
    %cst_10 = arith.constant 0.000000e+00 : f32
    %10 = vector.broadcast %cst_10 : f32 to vector<200x128xf32>
    %11 = arith.cmpf ogt, %9, %10 : vector<200x128xf32>
    %cst_11 = arith.constant 2.000000e-01 : f32
    %12 = vector.broadcast %cst_11 : f32 to vector<200x128xf32>
    %13 = arith.mulf %12, %9 : vector<200x128xf32>
    %14 = arith.select %11, %9, %13 : vector<200x128xi1>, vector<200x128xf32>
    %c0_12 = arith.constant 0 : index
    %c0_13 = arith.constant 0 : index
    %15 = vector.load %arg7[%c0_12, %c0_13] : memref<128x128xf32, #tpu.memory_space<vmem>>, vector<128x128xf32>
    %cst_14 = arith.constant dense<0.000000e+00> : vector<200x128xf32>
    %16 = tpu.matmul %14, %15, %cst_14 {dimension_numbers = #tpu.dot_dimension_numbers<[1], [0], [0], [1], [0, 0, 1, 1], [], []>} : vector<200x128xf32>, vector<128x128xf32>, vector<200x128xf32> -> vector<200x128xf32>
    %c0_15 = arith.constant 0 : index
    %c0_16 = arith.constant 0 : index
    %17 = vector.load %arg8[%c0_15, %c0_16] : memref<1x128xf32, #tpu.memory_space<vmem>>, vector<1x128xf32>
    %18 = vector.broadcast %17 : vector<1x128xf32> to vector<200x128xf32>
    %19 = arith.addf %16, %18 : vector<200x128xf32>
    %cst_17 = arith.constant 0.000000e+00 : f32
    %20 = vector.broadcast %cst_17 : f32 to vector<200x128xf32>
    %21 = arith.cmpf ogt, %19, %20 : vector<200x128xf32>
    %cst_18 = arith.constant 2.000000e-01 : f32
    %22 = vector.broadcast %cst_18 : f32 to vector<200x128xf32>
    %23 = arith.mulf %22, %19 : vector<200x128xf32>
    %24 = arith.select %21, %19, %23 : vector<200x128xi1>, vector<200x128xf32>
    %25 = tpu.transpose %24, [1, 0] : vector<200x128xf32> -> vector<128x200xf32>
    %c0_19 = arith.constant 0 : index
    %c0_20 = arith.constant 0 : index
    %26 = vector.load %arg9[%c0_19, %c0_20] : memref<1x128xf32, #tpu.memory_space<vmem>>, vector<1x128xf32>
    %cst_21 = arith.constant dense<0.000000e+00> : vector<1x200xf32>
    %27 = tpu.matmul %26, %25, %cst_21 {dimension_numbers = #tpu.dot_dimension_numbers<[1], [0], [0], [1], [0, 0, 1, 1], [], []>} : vector<1x128xf32>, vector<128x200xf32>, vector<1x200xf32> -> vector<1x200xf32>
    %c0_22 = arith.constant 0 : index
    %c0_23 = arith.constant 0 : index
    %28 = vector.load %arg10[%c0_22, %c0_23] : memref<1x1xf32, #tpu.memory_space<vmem>>, vector<1x1xf32>
    %29 = vector.broadcast %28 : vector<1x1xf32> to vector<1x200xf32>
    %30 = arith.addf %27, %29 : vector<1x200xf32>
    %31 = vector.shape_cast %30 : vector<1x200xf32> to vector<1x1x200xf32>
    %c0_24 = arith.constant 0 : index
    %c0_25 = arith.constant 0 : index
    %c0_26 = arith.constant 0 : index
    %32 = vector.load %arg11[%c0_24, %c0_25, %c0_26] : memref<1x1x200xf32, #tpu.memory_space<vmem>>, vector<1x1x200xf32>
    tpu.vector_store %arg11[%c0_24, %c0_25, %c0_26], %31 {strides = array<i32>} : memref<1x1x200xf32, #tpu.memory_space<vmem>>, vector<1x1x200xf32>,
    return
  }
  func.func @transform_0(%arg0: i32, %arg1: memref<1xi32, #tpu.memory_space<smem>>) -> (i32, i32) {
    %c0_i32 = arith.constant 0 : i32
    %c0_i32_0 = arith.constant 0 : i32
    return %arg0, %c0_i32 : i32, i32
  }
  func.func @transform_1(%arg0: i32, %arg1: memref<1xi32, #tpu.memory_space<smem>>) -> (i32, i32) {
    %c0_i32 = arith.constant 0 : i32
    %c0_i32_0 = arith.constant 0 : i32
    return %arg0, %c0_i32 : i32, i32
  }
  func.func @transform_2(%arg0: i32, %arg1: memref<1xi32, #tpu.memory_space<smem>>) -> (i32, i32) {
    %c0_i32 = arith.constant 0 : i32
    %c0_i32_0 = arith.constant 0 : i32
    %c0_i32_1 = arith.constant 0 : i32
    return %c0_i32, %c0_i32_0 : i32, i32
  }
  func.func @transform_3(%arg0: i32, %arg1: memref<1xi32, #tpu.memory_space<smem>>) -> (i32, i32) {
    %c0_i32 = arith.constant 0 : i32
    %c0_i32_0 = arith.constant 0 : i32
    %c0_i32_1 = arith.constant 0 : i32
    return %c0_i32, %c0_i32_0 : i32, i32
  }
  func.func @transform_4(%arg0: i32, %arg1: memref<1xi32, #tpu.memory_space<smem>>) -> (i32, i32) {
    %c0_i32 = arith.constant 0 : i32
    %c0_i32_0 = arith.constant 0 : i32
    %c0_i32_1 = arith.constant 0 : i32
    return %c0_i32, %c0_i32_0 : i32, i32
  }
  func.func @transform_5(%arg0: i32, %arg1: memref<1xi32, #tpu.memory_space<smem>>) -> (i32, i32) {
    %c0_i32 = arith.constant 0 : i32
    %c0_i32_0 = arith.constant 0 : i32
    %c0_i32_1 = arith.constant 0 : i32
    return %c0_i32, %c0_i32_0 : i32, i32
  }
  func.func @transform_6(%arg0: i32, %arg1: memref<1xi32, #tpu.memory_space<smem>>) -> (i32, i32) {
    %c0_i32 = arith.constant 0 : i32
    %c0_i32_0 = arith.constant 0 : i32
    %c0_i32_1 = arith.constant 0 : i32
    return %c0_i32, %c0_i32_0 : i32, i32
  }
  func.func @transform_7(%arg0: i32, %arg1: memref<1xi32, #tpu.memory_space<smem>>) -> (i32, i32) {
    %c0_i32 = arith.constant 0 : i32
    %c0_i32_0 = arith.constant 0 : i32
    %c0_i32_1 = arith.constant 0 : i32
    return %c0_i32, %c0_i32_0 : i32, i32
  }
  func.func @transform_8(%arg0: i32, %arg1: memref<1xi32, #tpu.memory_space<smem>>) -> (i32, i32) {
    %c0_i32 = arith.constant 0 : i32
    %c0_i32_0 = arith.constant 0 : i32
    %c0_i32_1 = arith.constant 0 : i32
    return %c0_i32, %c0_i32_0 : i32, i32
  }
  func.func @transform_9(%arg0: i32, %arg1: memref<1xi32, #tpu.memory_space<smem>>) -> (i32, i32, i32) {
    %c0_i32 = arith.constant 0 : i32
    %c0_i32_0 = arith.constant 0 : i32
    %c0_i32_1 = arith.constant 0 : i32
    return %arg0, %c0_i32, %c0_i32_0 : i32, i32, i32
  }
}

</mosaic_0001>

<llo_original>
// kernel: tpu_custom_call.1
$region0: #{tpu_custom_call.1}
  #allocation0 [shape = 'u32[]', space=smem, size = 0x4, offset = 0x4, fixed_abs, tag = 'smem constant byte address 0x4 - core index']
  #allocation1 [shape = 'u32[144,128]{1,0:T(1,128)}', space=vmem, size = 0x12000, scoped, tag = 'internal scratch']
  #allocation2 [shape = 's32[1]{0}', space=sflag, size = 0x4, scoped, tag = 'scoped memory for tpu_custom_call.1']
  #allocation3 [shape = 's32[1]{0:T(128)S(6)}', space=smem, size = 0x200, scoped, tag = 'prefetched SMEM operand 0']
  #allocation4 [shape = 'f32[1,1]{1,0:T(1,128)S(1)}', space=vmem, size = 0x200, scoped, tag = 'scoped memory for tpu_custom_call.1']
  %s0 = inlined_call_operand.<no memory space> [shape: s32[1], index: 0, kind: input, shape index: {}]
  %s1 = inlined_call_operand.vmem [shape: f32[200,64], index: 1, kind: input, shape index: {}]
  %s2 = inlined_call_operand.vmem [shape: f32[200,32], index: 2, kind: input, shape index: {}]
  %s3 = inlined_call_operand.vmem [shape: f32[64,128], index: 3, kind: input, shape index: {}]
  %s4 = inlined_call_operand.vmem [shape: f32[32,128], index: 4, kind: input, shape index: {}]
  %s5 = inlined_call_operand.vmem [shape: f32[1,128], index: 5, kind: input, shape index: {}]
  %s6 = inlined_call_operand.vmem [shape: f32[128,128], index: 6, kind: input, shape index: {}]
  %s7 = inlined_call_operand.vmem [shape: f32[1,128], index: 7, kind: input, shape index: {}]
  %s8 = inlined_call_operand.vmem [shape: f32[1,128], index: 8, kind: input, shape index: {}]
  %s9 = inlined_call_operand.<no memory space> [shape: f32[1,1], index: 9, kind: input, shape index: {}]
  %s10 = inlined_call_operand.hbm [shape: f32[1,1,200], index: 10, kind: output, shape index: {}]
  %s11 = sld [smem:[#allocation0]]
  $region46: #{tpu_custom_call.1} parent=0
    _
  %s13 = ssub.s32 1, %s11
  %s14 = scalar_select 0, %s13, %s11
  %15 = sst [smem:[#allocation3]] %s0
  %v16 = vstv %s9
  %17 = vst [vmem:[#allocation4] sm:$0x1] %v16
  $region1: #{tpu_custom_call.1} parent=0
    #allocation5 [shape = 'u8[1024]{0}', space=vmem, size = 0x400, scoped, tag = 'output window, operand 0, single buffered']
    #allocation6 [shape = 's32[1]{0}', space=sflag, size = 0x4, scoped, tag = 'scoped memory for tpu_custom_call.1']
    %18 = vsyncpa [#allocation6], 0
    // Predicated region
    $region2: #{tpu_custom_call.1} parent=1 // pred_check
      _
    $region3: #{tpu_custom_call.1} parent=1 // pred_check_branch
      %20 = sbr.rel (0) target = $region5
    $region4: #{tpu_custom_call.1} parent=1 // pred_region
      _
    $region5: #{tpu_custom_call.1} parent=1 // pred_fallthru
      _
    // Predicated region
    $region6: #{tpu_custom_call.1} parent=1 // pred_check
      _
    $region7: #{tpu_custom_call.1} parent=1 // pred_check_branch
      %22 = sbr.rel (0) target = $region9
    $region8: #{tpu_custom_call.1} parent=1 // pred_region
      _
    $region9: #{tpu_custom_call.1} parent=1 // pred_fallthru
      _
    // Predicated region
    $region10: #{tpu_custom_call.1} parent=1 // pred_check
      _
    $region11: #{tpu_custom_call.1} parent=1 // pred_check_branch
      %24 = sbr.rel (0) target = $region13
    $region12: #{tpu_custom_call.1} parent=1 // pred_region
      _
    $region13: #{tpu_custom_call.1} parent=1 // pred_fallthru
      _
    // Predicated region
    $region14: #{tpu_custom_call.1} parent=1 // pred_check
      _
    $region15: #{tpu_custom_call.1} parent=1 // pred_check_branch
      %26 = sbr.rel (0) target = $region17
    $region16: #{tpu_custom_call.1} parent=1 // pred_region
      _
    $region17: #{tpu_custom_call.1} parent=1 // pred_fallthru
      _
    // Predicated region
    $region18: #{tpu_custom_call.1} parent=1 // pred_check
      _
    $region19: #{tpu_custom_call.1} parent=1 // pred_check_branch
      %28 = sbr.rel (0) target = $region21
    $region20: #{tpu_custom_call.1} parent=1 // pred_region
      _
    $region21: #{tpu_custom_call.1} parent=1 // pred_fallthru
      _
    // Predicated region
    $region22: #{tpu_custom_call.1} parent=1 // pred_check
      _
    $region23: #{tpu_custom_call.1} parent=1 // pred_check_branch
      %30 = sbr.rel (0) target = $region25
    $region24: #{tpu_custom_call.1} parent=1 // pred_region
      _
    $region25: #{tpu_custom_call.1} parent=1 // pred_fallthru
      _
    // Predicated region
    $region26: #{tpu_custom_call.1} parent=1 // pred_check
      _
    $region27: #{tpu_custom_call.1} parent=1 // pred_check_branch
      %32 = sbr.rel (0) target = $region29
    $region28: #{tpu_custom_call.1} parent=1 // pred_region
      _
    $region29: #{tpu_custom_call.1} parent=1 // pred_fallthru
      _
    // Predicated region
    $region30: #{tpu_custom_call.1} parent=1 // pred_check
      _
    $region31: #{tpu_custom_call.1} parent=1 // pred_check_branch
      %34 = sbr.rel (0) target = $region33
    $region32: #{tpu_custom_call.1} parent=1 // pred_region
      _
    $region33: #{tpu_custom_call.1} parent=1 // pred_fallthru
      _
    // Predicated region
    $region34: #{tpu_custom_call.1} parent=1 // pred_check
      _
    $region35: #{tpu_custom_call.1} parent=1 // pred_check_branch
      %36 = sbr.rel (0) target = $region37
    $region36: #{tpu_custom_call.1} parent=1 // pred_region
      _
    $region37: #{tpu_custom_call.1} parent=1 // pred_fallthru
      _
    %v37 = vld [vmem:[%s1] sm:$0xff]
    %v38 = vld [vmem:[%s1 + $0x8] sm:$0xff]
    %v39 = vld [vmem:[%s1 + $0x10] sm:$0xff]
    %v40 = vld [vmem:[%s1 + $0x18] sm:$0xff]
    %v41 = vld [vmem:[%s1 + $0x20] sm:$0xff]
    %v42 = vld [vmem:[%s1 + $0x28] sm:$0xff]
    %v43 = vld [vmem:[%s1 + $0x30] sm:$0xff]
    %v44 = vld [vmem:[%s1 + $0x38] sm:$0xff]
    %v45 = vld [vmem:[%s1 + $0x40] sm:$0xff]
    %v46 = vld [vmem:[%s1 + $0x48] sm:$0xff]
    %v47 = vld [vmem:[%s1 + $0x50] sm:$0xff]
    %v48 = vld [vmem:[%s1 + $0x58] sm:$0xff]
    %v49 = vld [vmem:[%s1 + $0x60] sm:$0xff]
    %v50 = vld [vmem:[%s1 + $0x68] sm:$0xff]
    %v51 = vld [vmem:[%s1 + $0x70] sm:$0xff]
    %v52 = vld [vmem:[%s1 + $0x78] sm:$0xff]
    %v53 = vld [vmem:[%s1 + $0x80] sm:$0xff]
    %v54 = vld [vmem:[%s1 + $0x88] sm:$0xff]
    %v55 = vld [vmem:[%s1 + $0x90] sm:$0xff]
    %v56 = vld [vmem:[%s1 + $0x98] sm:$0xff]
    %v57 = vld [vmem:[%s1 + $0xa0] sm:$0xff]
    %v58 = vld [vmem:[%s1 + $0xa8] sm:$0xff]
    %v59 = vld [vmem:[%s1 + $0xb0] sm:$0xff]
    %v60 = vld [vmem:[%s1 + $0xb8] sm:$0xff]
    %v61 = vld [vmem:[%s1 + $0xc0] sm:$0xff]
    %v62 = vld [vmem:[%s3] sm:$0xff]
    %v63 = vld [vmem:[%s3 + $0x8] sm:$0xff]
    %v64 = vld [vmem:[%s3 + $0x10] sm:$0xff]
    %v65 = vld [vmem:[%s3 + $0x18] sm:$0xff]
    %v66 = vld [vmem:[%s3 + $0x20] sm:$0xff]
    %v67 = vld [vmem:[%s3 + $0x28] sm:$0xff]
    %v68 = vld [vmem:[%s3 + $0x30] sm:$0xff]
    %v69 = vld [vmem:[%s3 + $0x38] sm:$0xff]
    %v70 = vld [vmem:[%s2] sm:$0xff]
    %v71 = vld [vmem:[%s2 + $0x8] sm:$0xff]
    %v72 = vld [vmem:[%s2 + $0x10] sm:$0xff]
    %v73 = vld [vmem:[%s2 + $0x18] sm:$0xff]
    %v74 = vld [vmem:[%s2 + $0x20] sm:$0xff]
    %v75 = vld [vmem:[%s2 + $0x28] sm:$0xff]
    %v76 = vld [vmem:[%s2 + $0x30] sm:$0xff]
    %v77 = vld [vmem:[%s2 + $0x38] sm:$0xff]
    %v78 = vld [vmem:[%s2 + $0x40] sm:$0xff]
    %v79 = vld [vmem:[%s2 + $0x48] sm:$0xff]
    %v80 = vld [vmem:[%s2 + $0x50] sm:$0xff]
    %v81 = vld [vmem:[%s2 + $0x58] sm:$0xff]
    %v82 = vld [vmem:[%s2 + $0x60] sm:$0xff]
    %v83 = vld [vmem:[%s2 + $0x68] sm:$0xff]
    %v84 = vld [vmem:[%s2 + $0x70] sm:$0xff]
    %v85 = vld [vmem:[%s2 + $0x78] sm:$0xff]
    %v86 = vld [vmem:[%s2 + $0x80] sm:$0xff]
    %v87 = vld [vmem:[%s2 + $0x88] sm:$0xff]
    %v88 = vld [vmem:[%s2 + $0x90] sm:$0xff]
    %v89 = vld [vmem:[%s2 + $0x98] sm:$0xff]
    %v90 = vld [vmem:[%s2 + $0xa0] sm:$0xff]
    %v91 = vld [vmem:[%s2 + $0xa8] sm:$0xff]
    %v92 = vld [vmem:[%s2 + $0xb0] sm:$0xff]
    %v93 = vld [vmem:[%s2 + $0xb8] sm:$0xff]
    %v94 = vld [vmem:[%s2 + $0xc0] sm:$0xff]
    %v95 = vld [vmem:[%s4] sm:$0xff]
    %v96 = vld [vmem:[%s4 + $0x8] sm:$0xff]
    %v97 = vld [vmem:[%s4 + $0x10] sm:$0xff]
    %v98 = vld [vmem:[%s4 + $0x18] sm:$0xff]
    %vm99 = vcmask 261120
    %v101 = vsel %vm99, %v70, 0
    %v104 = vsel %vm99, %v71, 0
    %v107 = vsel %vm99, %v72, 0
    %v110 = vsel %vm99, %v73, 0
    %v113 = vsel %vm99, %v74, 0
    %v116 = vsel %vm99, %v75, 0
    %v119 = vsel %vm99, %v76, 0
    %v122 = vsel %vm99, %v77, 0
    %v125 = vsel %vm99, %v78, 0
    %v128 = vsel %vm99, %v79, 0
    %v131 = vsel %vm99, %v80, 0
    %v134 = vsel %vm99, %v81, 0
    %v137 = vsel %vm99, %v82, 0
    %v140 = vsel %vm99, %v83, 0
    %v143 = vsel %vm99, %v84, 0
    %v146 = vsel %vm99, %v85, 0
    %v149 = vsel %vm99, %v86, 0
    %v152 = vsel %vm99, %v87, 0
    %v155 = vsel %vm99, %v88, 0
    %v158 = vsel %vm99, %v89, 0
    %v161 = vsel %vm99, %v90, 0
    %v164 = vsel %vm99, %v91, 0
    %v167 = vsel %vm99, %v92, 0
    %v170 = vsel %vm99, %v93, 0
    %v173 = vsel %vm99, %v94, 0
    %175 = vmatprep.subr.mxu0 0.0
    %176 = vmatpush1.msra.mxu0 %v95
    %177 = vmatprep.subr.mxu0 0.0
    %178 = vmatpush1.msra.mxu0 %v96
    %179 = vmatprep.subr.mxu0 0.0
    %180 = vmatpush1.msra.mxu0 %v97
    %181 = vmatprep.subr.mxu0 0.0
    %182 = vmatpush1.msra.mxu0 %v98
    %183 = vmatprep.subr.mxu0 0.0
    %184 = vmatpush1.msra.mxu0 0.0
    %185 = vmatprep.subr.mxu0 0.0
    %186 = vmatpush1.msra.mxu0 0.0
    %187 = vmatprep.subr.mxu0 0.0
    %188 = vmatpush1.msra.mxu0 0.0
    %189 = vmatprep.subr.mxu0 0.0
    %190 = vmatpush1.msra.mxu0 0.0
    %191 = vmatprep.subr.mxu0 0.0
    %192 = vmatpush1.msra.mxu0 0.0
    %193 = vmatprep.subr.mxu0 0.0
    %194 = vmatpush1.msra.mxu0 0.0
    %195 = vmatprep.subr.mxu0 0.0
    %196 = vmatpush1.msra.mxu0 0.0
    %197 = vmatprep.subr.mxu0 0.0
    %198 = vmatpush1.msra.mxu0 0.0
    %199 = vmatprep.subr.mxu0 0.0
    %200 = vmatpush1.msra.mxu0 0.0
    %201 = vmatprep.subr.mxu0 0.0
    %202 = vmatpush1.msra.mxu0 0.0
    %203 = vmatprep.subr.mxu0 0.0
    %204 = vmatpush1.msra.mxu0 0.0
    %205 = vmatprep.subr.mxu0 0.0
    %206 = vmatpush1.msra.mxu0 0.0
    %207 = vmatprep.subr.mxu0 0.0
    %208 = vmatpush1.msra.mxu0 0.0
    %209 = vmatprep.subr.mxu0 0.0
    %210 = vmatpush1.msra.mxu0 0.0
    %211 = vmatprep.subr.mxu0 0.0
    %212 = vmatpush1.msra.mxu0 0.0
    %213 = vmatprep.subr.mxu0 0.0
    %214 = vmatpush1.msra.mxu0 0.0
    %215 = vmatprep.subr.mxu0 0.0
    %216 = vmatpush1.msra.mxu0 0.0
    %217 = vmatprep.subr.mxu0 0.0
    %218 = vmatpush1.msra.mxu0 0.0
    %219 = vmatprep.subr.mxu0 0.0
    %220 = vmatpush1.msra.mxu0 0.0
    %221 = vmatprep.subr.mxu0 0.0
    %222 = vmatpush1.msra.mxu0 0.0
    %223 = vmatprep.subr.mxu0 0.0
    %224 = vmatpush1.msra.mxu0 0.0
    %225 = vmatprep.subr.mxu0 0.0
    %226 = vmatpush1.msra.mxu0 0.0
    %227 = vmatprep.subr.mxu0 0.0
    %228 = vmatpush1.msra.mxu0 0.0
    %229 = vmatprep.subr.mxu0 0.0
    %230 = vmatpush1.msra.mxu0 0.0
    %231 = vmatprep.subr.mxu0 0.0
    %232 = vmatpush1.msra.mxu0 0.0
    %233 = vmatprep.subr.mxu0 0.0
    %234 = vmatpush1.msra.mxu0 0.0
    %235 = vmatprep.subr.mxu0 0.0
    %236 = vmatpush1.msra.mxu0 0.0
    %237 = vmatprep.subr.mxu0 0.0
    %238 = vmatpush1.msra.mxu0 0.0
    %239 = vmatprep.mubr.f32.mxu0 0.0
    %240 = vmatmul.mubr.f32.gmra.mrb[0].mxu0 %v101
    %v241 = vpop.f32.mrb[0].mxu0
    %v242 = vadd.f32 0.0, %v241
    %v243 = vpop.f32.mrb[0].mxu0
    %244 = vmatprep.mubr.f32.mxu0 0.0
    %245 = vmatmul.mubr.f32.gmra.mrb[0].mxu0 %v104
    %v246 = vpop.f32.mrb[0].mxu0
    %v247 = vadd.f32 0.0, %v246
    %v248 = vpop.f32.mrb[0].mxu0
    %249 = vmatprep.mubr.f32.mxu0 0.0
    %250 = vmatmul.mubr.f32.gmra.mrb[0].mxu0 %v107
    %v251 = vpop.f32.mrb[0].mxu0
    %v252 = vadd.f32 0.0, %v251
    %v253 = vpop.f32.mrb[0].mxu0
    %254 = vmatprep.mubr.f32.mxu0 0.0
    %255 = vmatmul.mubr.f32.gmra.mrb[0].mxu0 %v110
    %v256 = vpop.f32.mrb[0].mxu0
    %v257 = vadd.f32 0.0, %v256
    %v258 = vpop.f32.mrb[0].mxu0
    %259 = vmatprep.mubr.f32.mxu0 0.0
    %260 = vmatmul.mubr.f32.gmra.mrb[0].mxu0 %v113
    %v261 = vpop.f32.mrb[0].mxu0
    %v262 = vadd.f32 0.0, %v261
    %v263 = vpop.f32.mrb[0].mxu0
    %264 = vmatprep.mubr.f32.mxu0 0.0
    %265 = vmatmul.mubr.f32.gmra.mrb[0].mxu0 %v116
    %v266 = vpop.f32.mrb[0].mxu0
    %v267 = vadd.f32 0.0, %v266
    %v268 = vpop.f32.mrb[0].mxu0
    %269 = vmatprep.mubr.f32.mxu0 0.0
    %270 = vmatmul.mubr.f32.gmra.mrb[0].mxu0 %v119
    %v271 = vpop.f32.mrb[0].mxu0
    %v272 = vadd.f32 0.0, %v271
    %v273 = vpop.f32.mrb[0].mxu0
    %274 = vmatprep.mubr.f32.mxu0 0.0
    %275 = vmatmul.mubr.f32.gmra.mrb[0].mxu0 %v122
    %v276 = vpop.f32.mrb[0].mxu0
    %v277 = vadd.f32 0.0, %v276
    %v278 = vpop.f32.mrb[0].mxu0
    %279 = vmatprep.mubr.f32.mxu0 0.0
    %280 = vmatmul.mubr.f32.gmra.mrb[0].mxu0 %v125
    %v281 = vpop.f32.mrb[0].mxu0
    %v282 = vadd.f32 0.0, %v281
    %v283 = vpop.f32.mrb[0].mxu0
    %284 = vmatprep.mubr.f32.mxu0 0.0
    %285 = vmatmul.mubr.f32.gmra.mrb[0].mxu0 %v128
    %v286 = vpop.f32.mrb[0].mxu0
    %v287 = vadd.f32 0.0, %v286
    %v288 = vpop.f32.mrb[0].mxu0
    %289 = vmatprep.mubr.f32.mxu0 0.0
    %290 = vmatmul.mubr.f32.gmra.mrb[0].mxu0 %v131
    %v291 = vpop.f32.mrb[0].mxu0
    %v292 = vadd.f32 0.0, %v291
    %v293 = vpop.f32.mrb[0].mxu0
    %294 = vmatprep.mubr.f32.mxu0 0.0
    %295 = vmatmul.mubr.f32.gmra.mrb[0].mxu0 %v134
    %v296 = vpop.f32.mrb[0].mxu0
    %v297 = vadd.f32 0.0, %v296
    %v298 = vpop.f32.mrb[0].mxu0
    %299 = vmatprep.mubr.f32.mxu0 0.0
    %300 = vmatmul.mubr.f32.gmra.mrb[0].mxu0 %v137
    %v301 = vpop.f32.mrb[0].mxu0
    %v302 = vadd.f32 0.0, %v301
    %v303 = vpop.f32.mrb[0].mxu0
    %304 = vmatprep.mubr.f32.mxu0 0.0
    %305 = vmatmul.mubr.f32.gmra.mrb[0].mxu0 %v140
    %v306 = vpop.f32.mrb[0].mxu0
    %v307 = vadd.f32 0.0, %v306
    %v308 = vpop.f32.mrb[0].mxu0
    %309 = vmatprep.mubr.f32.mxu0 0.0
    %310 = vmatmul.mubr.f32.gmra.mrb[0].mxu0 %v143
    %v311 = vpop.f32.mrb[0].mxu0
    %v312 = vadd.f32 0.0, %v311
    %v313 = vpop.f32.mrb[0].mxu0
    %314 = vmatprep.mubr.f32.mxu0 0.0
    %315 = vmatmul.mubr.f32.gmra.mrb[0].mxu0 %v146
    %v316 = vpop.f32.mrb[0].mxu0
    %v317 = vadd.f32 0.0, %v316
    %v318 = vpop.f32.mrb[0].mxu0
    %319 = vmatprep.mubr.f32.mxu0 0.0
    %320 = vmatmul.mubr.f32.gmra.mrb[0].mxu0 %v149
    %v321 = vpop.f32.mrb[0].mxu0
    %v322 = vadd.f32 0.0, %v321
    %v323 = vpop.f32.mrb[0].mxu0
    %324 = vmatprep.mubr.f32.mxu0 0.0
    %325 = vmatmul.mubr.f32.gmra.mrb[0].mxu0 %v152
    %v326 = vpop.f32.mrb[0].mxu0
    %v327 = vadd.f32 0.0, %v326
    %v328 = vpop.f32.mrb[0].mxu0
    %329 = vmatprep.mubr.f32.mxu0 0.0
    %330 = vmatmul.mubr.f32.gmra.mrb[0].mxu0 %v155
    %v331 = vpop.f32.mrb[0].mxu0
    %v332 = vadd.f32 0.0, %v331
    %v333 = vpop.f32.mrb[0].mxu0
    %334 = vmatprep.mubr.f32.mxu0 0.0
    %335 = vmatmul.mubr.f32.gmra.mrb[0].mxu0 %v158
    %v336 = vpop.f32.mrb[0].mxu0
    %v337 = vadd.f32 0.0, %v336
    %v338 = vpop.f32.mrb[0].mxu0
    %339 = vmatprep.mubr.f32.mxu0 0.0
    %340 = vmatmul.mubr.f32.gmra.mrb[0].mxu0 %v161
    %v341 = vpop.f32.mrb[0].mxu0
    %v342 = vadd.f32 0.0, %v341
    %v343 = vpop.f32.mrb[0].mxu0
    %344 = vmatprep.mubr.f32.mxu0 0.0
    %345 = vmatmul.mubr.f32.gmra.mrb[0].mxu0 %v164
    %v346 = vpop.f32.mrb[0].mxu0
    %v347 = vadd.f32 0.0, %v346
    %v348 = vpop.f32.mrb[0].mxu0
    %349 = vmatprep.mubr.f32.mxu0 0.0
    %350 = vmatmul.mubr.f32.gmra.mrb[0].mxu0 %v167
    %v351 = vpop.f32.mrb[0].mxu0
    %v352 = vadd.f32 0.0, %v351
    %v353 = vpop.f32.mrb[0].mxu0
    %354 = vmatprep.mubr.f32.mxu0 0.0
    %355 = vmatmul.mubr.f32.gmra.mrb[0].mxu0 %v170
    %v356 = vpop.f32.mrb[0].mxu0
    %v357 = vadd.f32 0.0, %v356
    %v358 = vpop.f32.mrb[0].mxu0
    %359 = vmatprep.mubr.f32.mxu0 0.0
    %360 = vmatmul.mubr.f32.gmra.mrb[0].mxu0 %v173
    %v361 = vpop.f32.mrb[0].mxu0
    %v362 = vadd.f32 0.0, %v361
    %v363 = vpop.f32.mrb[0].mxu0
    %364 = vdwg.mxu0
    %vm365 = vcmask 523264
    %v367 = vsel %vm365, %v37, 0
    %v370 = vsel %vm365, %v38, 0
    %v373 = vsel %vm365, %v39, 0
    %v376 = vsel %vm365, %v40, 0
    %v379 = vsel %vm365, %v41, 0
    %v382 = vsel %vm365, %v42, 0
    %v385 = vsel %vm365, %v43, 0
    %v388 = vsel %vm365, %v44, 0
    %v391 = vsel %vm365, %v45, 0
    %v394 = vsel %vm365, %v46, 0
    %v397 = vsel %vm365, %v47, 0
    %v400 = vsel %vm365, %v48, 0
    %v403 = vsel %vm365, %v49, 0
    %v406 = vsel %vm365, %v50, 0
    %v409 = vsel %vm365, %v51, 0
    %v412 = vsel %vm365, %v52, 0
    %v415 = vsel %vm365, %v53, 0
    %v418 = vsel %vm365, %v54, 0
    %v421 = vsel %vm365, %v55, 0
    %v424 = vsel %vm365, %v56, 0
    %v427 = vsel %vm365, %v57, 0
    %v430 = vsel %vm365, %v58, 0
    %v433 = vsel %vm365, %v59, 0
    %v436 = vsel %vm365, %v60, 0
    %v439 = vsel %vm365, %v61, 0
    %441 = vmatprep.subr.mxu0 0.0
    %442 = vmatpush1.msra.mxu0 %v62
    %443 = vmatprep.subr.mxu0 0.0
    %444 = vmatpush1.msra.mxu0 %v63
    %445 = vmatprep.subr.mxu0 0.0
    %446 = vmatpush1.msra.mxu0 %v64
    %447 = vmatprep.subr.mxu0 0.0
    %448 = vmatpush1.msra.mxu0 %v65
    %449 = vmatprep.subr.mxu0 0.0
    %450 = vmatpush1.msra.mxu0 %v66
    %451 = vmatprep.subr.mxu0 0.0
    %452 = vmatpush1.msra.mxu0 %v67
    %453 = vmatprep.subr.mxu0 0.0
    %454 = vmatpush1.msra.mxu0 %v68
    %455 = vmatprep.subr.mxu0 0.0
    %456 = vmatpush1.msra.mxu0 %v69
    %457 = vmatprep.subr.mxu0 0.0
    %458 = vmatpush1.msra.mxu0 0.0
    %459 = vmatprep.subr.mxu0 0.0
    %460 = vmatpush1.msra.mxu0 0.0
    %461 = vmatprep.subr.mxu0 0.0
    %462 = vmatpush1.msra.mxu0 0.0
    %463 = vmatprep.subr.mxu0 0.0
    %464 = vmatpush1.msra.mxu0 0.0
    %465 = vmatprep.subr.mxu0 0.0
    %466 = vmatpush1.msra.mxu0 0.0
    %467 = vmatprep.subr.mxu0 0.0
    %468 = vmatpush1.msra.mxu0 0.0
    %469 = vmatprep.subr.mxu0 0.0
    %470 = vmatpush1.msra.mxu0 0.0
    %471 = vmatprep.subr.mxu0 0.0
    %472 = vmatpush1.msra.mxu0 0.0
    %473 = vmatprep.subr.mxu0 0.0
    %474 = vmatpush1.msra.mxu0 0.0
    %475 = vmatprep.subr.mxu0 0.0
    %476 = vmatpush1.msra.mxu0 0.0
    %477 = vmatprep.subr.mxu0 0.0
    %478 = vmatpush1.msra.mxu0 0.0
    %479 = vmatprep.subr.mxu0 0.0
    %480 = vmatpush1.msra.mxu0 0.0
    %481 = vmatprep.subr.mxu0 0.0
    %482 = vmatpush1.msra.mxu0 0.0
    %483 = vmatprep.subr.mxu0 0.0
    %484 = vmatpush1.msra.mxu0 0.0
    %485 = vmatprep.subr.mxu0 0.0
    %486 = vmatpush1.msra.mxu0 0.0
    %487 = vmatprep.subr.mxu0 0.0
    %488 = vmatpush1.msra.mxu0 0.0
    %489 = vmatprep.subr.mxu0 0.0
    %490 = vmatpush1.msra.mxu0 0.0
    %491 = vmatprep.subr.mxu0 0.0
    %492 = vmatpush1.msra.mxu0 0.0
    %493 = vmatprep.subr.mxu0 0.0
    %494 = vmatpush1.msra.mxu0 0.0
    %495 = vmatprep.subr.mxu0 0.0
    %496 = vmatpush1.msra.mxu0 0.0
    %497 = vmatprep.subr.mxu0 0.0
    %498 = vmatpush1.msra.mxu0 0.0
    %499 = vmatprep.subr.mxu0 0.0
    %500 = vmatpush1.msra.mxu0 0.0
    %501 = vmatprep.subr.mxu0 0.0
    %502 = vmatpush1.msra.mxu0 0.0
    %503 = vmatprep.subr.mxu0 0.0
    %504 = vmatpush1.msra.mxu0 0.0
    %505 = vmatprep.mubr.f32.mxu0 0.0
    %506 = vmatmul.mubr.f32.gmra.mrb[0].mxu0 %v367
    %v507 = vpop.f32.mrb[0].mxu0
    %v508 = vadd.f32 %v242, %v507
    %v509 = vpop.f32.mrb[0].mxu0
    %510 = vmatprep.mubr.f32.mxu0 0.0
    %511 = vmatmul.mubr.f32.gmra.mrb[0].mxu0 %v370
    %v512 = vpop.f32.mrb[0].mxu0
    %v513 = vadd.f32 %v247, %v512
    %v514 = vpop.f32.mrb[0].mxu0
    %515 = vmatprep.mubr.f32.mxu0 0.0
    %516 = vmatmul.mubr.f32.gmra.mrb[0].mxu0 %v373
    %v517 = vpop.f32.mrb[0].mxu0
    %v518 = vadd.f32 %v252, %v517
    %v519 = vpop.f32.mrb[0].mxu0
    %520 = vmatprep.mubr.f32.mxu0 0.0
    %521 = vmatmul.mubr.f32.gmra.mrb[0].mxu0 %v376
    %v522 = vpop.f32.mrb[0].mxu0
    %v523 = vadd.f32 %v257, %v522
    %v524 = vpop.f32.mrb[0].mxu0
    %525 = vmatprep.mubr.f32.mxu0 0.0
    %526 = vmatmul.mubr.f32.gmra.mrb[0].mxu0 %v379
    %v527 = vpop.f32.mrb[0].mxu0
    %v528 = vadd.f32 %v262, %v527
    %v529 = vpop.f32.mrb[0].mxu0
    %530 = vmatprep.mubr.f32.mxu0 0.0
    %531 = vmatmul.mubr.f32.gmra.mrb[0].mxu0 %v382
    %v532 = vpop.f32.mrb[0].mxu0
    %v533 = vadd.f32 %v267, %v532
    %v534 = vpop.f32.mrb[0].mxu0
    %535 = vmatprep.mubr.f32.mxu0 0.0
    %536 = vmatmul.mubr.f32.gmra.mrb[0].mxu0 %v385
    %v537 = vpop.f32.mrb[0].mxu0
    %v538 = vadd.f32 %v272, %v537
    %v539 = vpop.f32.mrb[0].mxu0
    %540 = vmatprep.mubr.f32.mxu0 0.0
    %541 = vmatmul.mubr.f32.gmra.mrb[0].mxu0 %v388
    %v542 = vpop.f32.mrb[0].mxu0
    %v543 = vadd.f32 %v277, %v542
    %v544 = vpop.f32.mrb[0].mxu0
    %545 = vmatprep.mubr.f32.mxu0 0.0
    %546 = vmatmul.mubr.f32.gmra.mrb[0].mxu0 %v391
    %v547 = vpop.f32.mrb[0].mxu0
    %v548 = vadd.f32 %v282, %v547
    %v549 = vpop.f32.mrb[0].mxu0
    %550 = vmatprep.mubr.f32.mxu0 0.0
    %551 = vmatmul.mubr.f32.gmra.mrb[0].mxu0 %v394
    %v552 = vpop.f32.mrb[0].mxu0
    %v553 = vadd.f32 %v287, %v552
    %v554 = vpop.f32.mrb[0].mxu0
    %555 = vmatprep.mubr.f32.mxu0 0.0
    %556 = vmatmul.mubr.f32.gmra.mrb[0].mxu0 %v397
    %v557 = vpop.f32.mrb[0].mxu0
    %v558 = vadd.f32 %v292, %v557
    %v559 = vpop.f32.mrb[0].mxu0
    %560 = vmatprep.mubr.f32.mxu0 0.0
    %561 = vmatmul.mubr.f32.gmra.mrb[0].mxu0 %v400
    %v562 = vpop.f32.mrb[0].mxu0
    %v563 = vadd.f32 %v297, %v562
    %v564 = vpop.f32.mrb[0].mxu0
    %565 = vmatprep.mubr.f32.mxu0 0.0
    %566 = vmatmul.mubr.f32.gmra.mrb[0].mxu0 %v403
    %v567 = vpop.f32.mrb[0].mxu0
    %v568 = vadd.f32 %v302, %v567
    %v569 = vpop.f32.mrb[0].mxu0
    %570 = vmatprep.mubr.f32.mxu0 0.0
    %571 = vmatmul.mubr.f32.gmra.mrb[0].mxu0 %v406
    %v572 = vpop.f32.mrb[0].mxu0
    %v573 = vadd.f32 %v307, %v572
    %v574 = vpop.f32.mrb[0].mxu0
    %575 = vmatprep.mubr.f32.mxu0 0.0
    %576 = vmatmul.mubr.f32.gmra.mrb[0].mxu0 %v409
    %v577 = vpop.f32.mrb[0].mxu0
    %v578 = vadd.f32 %v312, %v577
    %v579 = vpop.f32.mrb[0].mxu0
    %580 = vmatprep.mubr.f32.mxu0 0.0
    %581 = vmatmul.mubr.f32.gmra.mrb[0].mxu0 %v412
    %v582 = vpop.f32.mrb[0].mxu0
    %v583 = vadd.f32 %v317, %v582
    %v584 = vpop.f32.mrb[0].mxu0
    %585 = vmatprep.mubr.f32.mxu0 0.0
    %586 = vmatmul.mubr.f32.gmra.mrb[0].mxu0 %v415
    %v587 = vpop.f32.mrb[0].mxu0
    %v588 = vadd.f32 %v322, %v587
    %v589 = vpop.f32.mrb[0].mxu0
    %590 = vmatprep.mubr.f32.mxu0 0.0
    %591 = vmatmul.mubr.f32.gmra.mrb[0].mxu0 %v418
    %v592 = vpop.f32.mrb[0].mxu0
    %v593 = vadd.f32 %v327, %v592
    %v594 = vpop.f32.mrb[0].mxu0
    %595 = vmatprep.mubr.f32.mxu0 0.0
    %596 = vmatmul.mubr.f32.gmra.mrb[0].mxu0 %v421
    %v597 = vpop.f32.mrb[0].mxu0
    %v598 = vadd.f32 %v332, %v597
    %v599 = vpop.f32.mrb[0].mxu0
    %600 = vmatprep.mubr.f32.mxu0 0.0
    %601 = vmatmul.mubr.f32.gmra.mrb[0].mxu0 %v424
    %v602 = vpop.f32.mrb[0].mxu0
    %v603 = vadd.f32 %v337, %v602
    %v604 = vpop.f32.mrb[0].mxu0
    %605 = vmatprep.mubr.f32.mxu0 0.0
    %606 = vmatmul.mubr.f32.gmra.mrb[0].mxu0 %v427
    %v607 = vpop.f32.mrb[0].mxu0
    %v608 = vadd.f32 %v342, %v607
    %v609 = vpop.f32.mrb[0].mxu0
    %610 = vmatprep.mubr.f32.mxu0 0.0
    %611 = vmatmul.mubr.f32.gmra.mrb[0].mxu0 %v430
    %v612 = vpop.f32.mrb[0].mxu0
    %v613 = vadd.f32 %v347, %v612
    %v614 = vpop.f32.mrb[0].mxu0
    %615 = vmatprep.mubr.f32.mxu0 0.0
    %616 = vmatmul.mubr.f32.gmra.mrb[0].mxu0 %v433
    %v617 = vpop.f32.mrb[0].mxu0
    %v618 = vadd.f32 %v352, %v617
    %v619 = vpop.f32.mrb[0].mxu0
    %620 = vmatprep.mubr.f32.mxu0 0.0
    %621 = vmatmul.mubr.f32.gmra.mrb[0].mxu0 %v436
    %v622 = vpop.f32.mrb[0].mxu0
    %v623 = vadd.f32 %v357, %v622
    %v624 = vpop.f32.mrb[0].mxu0
    %625 = vmatprep.mubr.f32.mxu0 0.0
    %626 = vmatmul.mubr.f32.gmra.mrb[0].mxu0 %v439
    %v627 = vpop.f32.mrb[0].mxu0
    %v628 = vadd.f32 %v362, %v627
    %v629 = vpop.f32.mrb[0].mxu0
    %630 = vdwg.mxu0
    %v631 = vld [vmem:[%s5] sm:$0x1]
    %v633 = vlaneseq
    %v634 = vshrl.u32 %v633, 7
    %v635 = vsub.s32 0, %v634
    %v636 = vrot.slane %v631, %v635
    %v638 = vadd.f32 %v508, %v636
    %v639 = vadd.f32 %v513, %v636
    %v640 = vadd.f32 %v518, %v636
    %v641 = vadd.f32 %v523, %v636
    %v642 = vadd.f32 %v528, %v636
    %v643 = vadd.f32 %v533, %v636
    %v644 = vadd.f32 %v538, %v636
    %v645 = vadd.f32 %v543, %v636
    %v646 = vadd.f32 %v548, %v636
    %v647 = vadd.f32 %v553, %v636
    %v648 = vadd.f32 %v558, %v636
    %v649 = vadd.f32 %v563, %v636
    %v650 = vadd.f32 %v568, %v636
    %v651 = vadd.f32 %v573, %v636
    %v652 = vadd.f32 %v578, %v636
    %v653 = vadd.f32 %v583, %v636
    %v654 = vadd.f32 %v588, %v636
    %v655 = vadd.f32 %v593, %v636
    %v656 = vadd.f32 %v598, %v636
    %v657 = vadd.f32 %v603, %v636
    %v658 = vadd.f32 %v608, %v636
    %v659 = vadd.f32 %v613, %v636
    %v660 = vadd.f32 %v618, %v636
    %v661 = vadd.f32 %v623, %v636
    %v662 = vadd.f32 %v628, %v636
    %vm663 = vcmp.gt.f32.partialorder %v638, 0.0
    %vm664 = vcmp.gt.f32.partialorder %v639, 0.0
    %vm665 = vcmp.gt.f32.partialorder %v640, 0.0
    %vm666 = vcmp.gt.f32.partialorder %v641, 0.0
    %vm667 = vcmp.gt.f32.partialorder %v642, 0.0
    %vm668 = vcmp.gt.f32.partialorder %v643, 0.0
    %vm669 = vcmp.gt.f32.partialorder %v644, 0.0
    %vm670 = vcmp.gt.f32.partialorder %v645, 0.0
    %vm671 = vcmp.gt.f32.partialorder %v646, 0.0
    %vm672 = vcmp.gt.f32.partialorder %v647, 0.0
    %vm673 = vcmp.gt.f32.partialorder %v648, 0.0
    %vm674 = vcmp.gt.f32.partialorder %v649, 0.0
    %vm675 = vcmp.gt.f32.partialorder %v650, 0.0
    %vm676 = vcmp.gt.f32.partialorder %v651, 0.0
    %vm677 = vcmp.gt.f32.partialorder %v652, 0.0
    %vm678 = vcmp.gt.f32.partialorder %v653, 0.0
    %vm679 = vcmp.gt.f32.partialorder %v654, 0.0
    %vm680 = vcmp.gt.f32.partialorder %v655, 0.0
    %vm681 = vcmp.gt.f32.partialorder %v656, 0.0
    %vm682 = vcmp.gt.f32.partialorder %v657, 0.0
    %vm683 = vcmp.gt.f32.partialorder %v658, 0.0
    %vm684 = vcmp.gt.f32.partialorder %v659, 0.0
    %vm685 = vcmp.gt.f32.partialorder %v660, 0.0
    %vm686 = vcmp.gt.f32.partialorder %v661, 0.0
    %vm687 = vcmp.gt.f32.partialorder %v662, 0.0
    %v688 = vmul.f32 %v638, 0.2
    %v689 = vmul.f32 %v639, 0.2
    %v690 = vmul.f32 %v640, 0.2
    %v691 = vmul.f32 %v641, 0.2
    %v692 = vmul.f32 %v642, 0.2
    %v693 = vmul.f32 %v643, 0.2
    %v694 = vmul.f32 %v644, 0.2
    %v695 = vmul.f32 %v645, 0.2
    %v696 = vmul.f32 %v646, 0.2
    %v697 = vmul.f32 %v647, 0.2
    %v698 = vmul.f32 %v648, 0.2
    %v699 = vmul.f32 %v649, 0.2
    %v700 = vmul.f32 %v650, 0.2
    %v701 = vmul.f32 %v651, 0.2
    %v702 = vmul.f32 %v652, 0.2
    %v703 = vmul.f32 %v653, 0.2
    %v704 = vmul.f32 %v654, 0.2
    %v705 = vmul.f32 %v655, 0.2
    %v706 = vmul.f32 %v656, 0.2
    %v707 = vmul.f32 %v657, 0.2
    %v708 = vmul.f32 %v658, 0.2
    %v709 = vmul.f32 %v659, 0.2
    %v710 = vmul.f32 %v660, 0.2
    %v711 = vmul.f32 %v661, 0.2
    %v712 = vmul.f32 %v662, 0.2
    %v713 = vsel %vm663, %v638, %v688
    %v714 = vsel %vm664, %v639, %v689
    %v715 = vsel %vm665, %v640, %v690
    %v716 = vsel %vm666, %v641, %v691
    %v717 = vsel %vm667, %v642, %v692
    %v718 = vsel %vm668, %v643, %v693
    %v719 = vsel %vm669, %v644, %v694
    %v720 = vsel %vm670, %v645, %v695
    %v721 = vsel %vm671, %v646, %v696
    %v722 = vsel %vm672, %v647, %v697
    %v723 = vsel %vm673, %v648, %v698
    %v724 = vsel %vm674, %v649, %v699
    %v725 = vsel %vm675, %v650, %v700
    %v726 = vsel %vm676, %v651, %v701
    %v727 = vsel %vm677, %v652, %v702
    %v728 = vsel %vm678, %v653, %v703
    %v729 = vsel %vm679, %v654, %v704
    %v730 = vsel %vm680, %v655, %v705
    %v731 = vsel %vm681, %v656, %v706
    %v732 = vsel %vm682, %v657, %v707
    %v733 = vsel %vm683, %v658, %v708
    %v734 = vsel %vm684, %v659, %v709
    %v735 = vsel %vm685, %v660, %v710
    %v736 = vsel %vm686, %v661, %v711
    %v737 = vsel %vm687, %v662, %v712
    %v738 = vld [vmem:[%s6] sm:$0xff]
    %v739 = vld [vmem:[%s6 + $0x8] sm:$0xff]
    %v740 = vld [vmem:[%s6 + $0x10] sm:$0xff]
    %v741 = vld [vmem:[%s6 + $0x18] sm:$0xff]
    %v742 = vld [vmem:[%s6 + $0x20] sm:$0xff]
    %v743 = vld [vmem:[%s6 + $0x28] sm:$0xff]
    %v744 = vld [vmem:[%s6 + $0x30] sm:$0xff]
    %v745 = vld [vmem:[%s6 + $0x38] sm:$0xff]
    %v746 = vld [vmem:[%s6 + $0x40] sm:$0xff]
    %v747 = vld [vmem:[%s6 + $0x48] sm:$0xff]
    %v748 = vld [vmem:[%s6 + $0x50] sm:$0xff]
    %v749 = vld [vmem:[%s6 + $0x58] sm:$0xff]
    %v750 = vld [vmem:[%s6 + $0x60] sm:$0xff]
    %v751 = vld [vmem:[%s6 + $0x68] sm:$0xff]
    %v752 = vld [vmem:[%s6 + $0x70] sm:$0xff]
    %v753 = vld [vmem:[%s6 + $0x78] sm:$0xff]
    %v754 = vld [vmem:[%s7] sm:$0x1]
    %v756 = vlaneseq
    %v757 = vshrl.u32 %v756, 7
    %v758 = vsub.s32 0, %v757
    %v759 = vrot.slane %v754, %v758
    %761 = vmatprep.subr.mxu0 0.0
    %762 = vmatpush1.msra.mxu0 %v738
    %763 = vmatprep.subr.mxu0 0.0
    %764 = vmatpush1.msra.mxu0 %v739
    %765 = vmatprep.subr.mxu0 0.0
    %766 = vmatpush1.msra.mxu0 %v740
    %767 = vmatprep.subr.mxu0 0.0
    %768 = vmatpush1.msra.mxu0 %v741
    %769 = vmatprep.subr.mxu0 0.0
    %770 = vmatpush1.msra.mxu0 %v742
    %771 = vmatprep.subr.mxu0 0.0
    %772 = vmatpush1.msra.mxu0 %v743
    %773 = vmatprep.subr.mxu0 0.0
    %774 = vmatpush1.msra.mxu0 %v744
    %775 = vmatprep.subr.mxu0 0.0
    %776 = vmatpush1.msra.mxu0 %v745
    %777 = vmatprep.subr.mxu0 0.0
    %778 = vmatpush1.msra.mxu0 %v746
    %779 = vmatprep.subr.mxu0 0.0
    %780 = vmatpush1.msra.mxu0 %v747
    %781 = vmatprep.subr.mxu0 0.0
    %782 = vmatpush1.msra.mxu0 %v748
    %783 = vmatprep.subr.mxu0 0.0
    %784 = vmatpush1.msra.mxu0 %v749
    %785 = vmatprep.subr.mxu0 0.0
    %786 = vmatpush1.msra.mxu0 %v750
    %787 = vmatprep.subr.mxu0 0.0
    %788 = vmatpush1.msra.mxu0 %v751
    %789 = vmatprep.subr.mxu0 0.0
    %790 = vmatpush1.msra.mxu0 %v752
    %791 = vmatprep.subr.mxu0 0.0
    %792 = vmatpush1.msra.mxu0 %v753
    %793 = vmatprep.subr.mxu0 0.0
    %794 = vmatpush1.msra.mxu0 0.0
    %795 = vmatprep.subr.mxu0 0.0
    %796 = vmatpush1.msra.mxu0 0.0
    %797 = vmatprep.subr.mxu0 0.0
    %798 = vmatpush1.msra.mxu0 0.0
    %799 = vmatprep.subr.mxu0 0.0
    %800 = vmatpush1.msra.mxu0 0.0
    %801 = vmatprep.subr.mxu0 0.0
    %802 = vmatpush1.msra.mxu0 0.0
    %803 = vmatprep.subr.mxu0 0.0
    %804 = vmatpush1.msra.mxu0 0.0
    %805 = vmatprep.subr.mxu0 0.0
    %806 = vmatpush1.msra.mxu0 0.0
    %807 = vmatprep.subr.mxu0 0.0
    %808 = vmatpush1.msra.mxu0 0.0
    %809 = vmatprep.subr.mxu0 0.0
    %810 = vmatpush1.msra.mxu0 0.0
    %811 = vmatprep.subr.mxu0 0.0
    %812 = vmatpush1.msra.mxu0 0.0
    %813 = vmatprep.subr.mxu0 0.0
    %814 = vmatpush1.msra.mxu0 0.0
    %815 = vmatprep.subr.mxu0 0.0
    %816 = vmatpush1.msra.mxu0 0.0
    %817 = vmatprep.subr.mxu0 0.0
    %818 = vmatpush1.msra.mxu0 0.0
    %819 = vmatprep.subr.mxu0 0.0
    %820 = vmatpush1.msra.mxu0 0.0
    %821 = vmatprep.subr.mxu0 0.0
    %822 = vmatpush1.msra.mxu0 0.0
    %823 = vmatprep.subr.mxu0 0.0
    %824 = vmatpush1.msra.mxu0 0.0
    %825 = vmatprep.mubr.f32.mxu0 0.0
    %826 = vmatmul.mubr.f32.gmra.mrb[0].mxu0 %v713
    %v827 = vpop.f32.mrb[0].mxu0
    %v828 = vadd.f32 %v759, %v827
    %v829 = vpop.f32.mrb[0].mxu0
    %830 = vmatprep.mubr.f32.mxu0 0.0
    %831 = vmatmul.mubr.f32.gmra.mrb[0].mxu0 %v714
    %v832 = vpop.f32.mrb[0].mxu0
    %v833 = vadd.f32 %v759, %v832
    %v834 = vpop.f32.mrb[0].mxu0
    %835 = vmatprep.mubr.f32.mxu0 0.0
    %836 = vmatmul.mubr.f32.gmra.mrb[0].mxu0 %v715
    %v837 = vpop.f32.mrb[0].mxu0
    %v838 = vadd.f32 %v759, %v837
    %v839 = vpop.f32.mrb[0].mxu0
    %840 = vmatprep.mubr.f32.mxu0 0.0
    %841 = vmatmul.mubr.f32.gmra.mrb[0].mxu0 %v716
    %v842 = vpop.f32.mrb[0].mxu0
    %v843 = vadd.f32 %v759, %v842
    %v844 = vpop.f32.mrb[0].mxu0
    %845 = vmatprep.mubr.f32.mxu0 0.0
    %846 = vmatmul.mubr.f32.gmra.mrb[0].mxu0 %v717
    %v847 = vpop.f32.mrb[0].mxu0
    %v848 = vadd.f32 %v759, %v847
    %v849 = vpop.f32.mrb[0].mxu0
    %850 = vmatprep.mubr.f32.mxu0 0.0
    %851 = vmatmul.mubr.f32.gmra.mrb[0].mxu0 %v718
    %v852 = vpop.f32.mrb[0].mxu0
    %v853 = vadd.f32 %v759, %v852
    %v854 = vpop.f32.mrb[0].mxu0
    %855 = vmatprep.mubr.f32.mxu0 0.0
    %856 = vmatmul.mubr.f32.gmra.mrb[0].mxu0 %v719
    %v857 = vpop.f32.mrb[0].mxu0
    %v858 = vadd.f32 %v759, %v857
    %v859 = vpop.f32.mrb[0].mxu0
    %860 = vmatprep.mubr.f32.mxu0 0.0
    %861 = vmatmul.mubr.f32.gmra.mrb[0].mxu0 %v720
    %v862 = vpop.f32.mrb[0].mxu0
    %v863 = vadd.f32 %v759, %v862
    %v864 = vpop.f32.mrb[0].mxu0
    %865 = vmatprep.mubr.f32.mxu0 0.0
    %866 = vmatmul.mubr.f32.gmra.mrb[0].mxu0 %v721
    %v867 = vpop.f32.mrb[0].mxu0
    %v868 = vadd.f32 %v759, %v867
    %v869 = vpop.f32.mrb[0].mxu0
    %870 = vmatprep.mubr.f32.mxu0 0.0
    %871 = vmatmul.mubr.f32.gmra.mrb[0].mxu0 %v722
    %v872 = vpop.f32.mrb[0].mxu0
    %v873 = vadd.f32 %v759, %v872
    %v874 = vpop.f32.mrb[0].mxu0
    %875 = vmatprep.mubr.f32.mxu0 0.0
    %876 = vmatmul.mubr.f32.gmra.mrb[0].mxu0 %v723
    %v877 = vpop.f32.mrb[0].mxu0
    %v878 = vadd.f32 %v759, %v877
    %v879 = vpop.f32.mrb[0].mxu0
    %880 = vmatprep.mubr.f32.mxu0 0.0
    %881 = vmatmul.mubr.f32.gmra.mrb[0].mxu0 %v724
    %v882 = vpop.f32.mrb[0].mxu0
    %v883 = vadd.f32 %v759, %v882
    %v884 = vpop.f32.mrb[0].mxu0
    %885 = vmatprep.mubr.f32.mxu0 0.0
    %886 = vmatmul.mubr.f32.gmra.mrb[0].mxu0 %v725
    %v887 = vpop.f32.mrb[0].mxu0
    %v888 = vadd.f32 %v759, %v887
    %v889 = vpop.f32.mrb[0].mxu0
    %890 = vmatprep.mubr.f32.mxu0 0.0
    %891 = vmatmul.mubr.f32.gmra.mrb[0].mxu0 %v726
    %v892 = vpop.f32.mrb[0].mxu0
    %v893 = vadd.f32 %v759, %v892
    %v894 = vpop.f32.mrb[0].mxu0
    %895 = vmatprep.mubr.f32.mxu0 0.0
    %896 = vmatmul.mubr.f32.gmra.mrb[0].mxu0 %v727
    %v897 = vpop.f32.mrb[0].mxu0
    %v898 = vadd.f32 %v759, %v897
    %v899 = vpop.f32.mrb[0].mxu0
    %900 = vmatprep.mubr.f32.mxu0 0.0
    %901 = vmatmul.mubr.f32.gmra.mrb[0].mxu0 %v728
    %v902 = vpop.f32.mrb[0].mxu0
    %v903 = vadd.f32 %v759, %v902
    %v904 = vpop.f32.mrb[0].mxu0
    %905 = vmatprep.mubr.f32.mxu0 0.0
    %906 = vmatmul.mubr.f32.gmra.mrb[0].mxu0 %v729
    %v907 = vpop.f32.mrb[0].mxu0
    %v908 = vadd.f32 %v759, %v907
    %v909 = vpop.f32.mrb[0].mxu0
    %910 = vmatprep.mubr.f32.mxu0 0.0
    %911 = vmatmul.mubr.f32.gmra.mrb[0].mxu0 %v730
    %v912 = vpop.f32.mrb[0].mxu0
    %v913 = vadd.f32 %v759, %v912
    %v914 = vpop.f32.mrb[0].mxu0
    %915 = vmatprep.mubr.f32.mxu0 0.0
    %916 = vmatmul.mubr.f32.gmra.mrb[0].mxu0 %v731
    %v917 = vpop.f32.mrb[0].mxu0
    %v918 = vadd.f32 %v759, %v917
    %v919 = vpop.f32.mrb[0].mxu0
    %920 = vmatprep.mubr.f32.mxu0 0.0
    %921 = vmatmul.mubr.f32.gmra.mrb[0].mxu0 %v732
    %v922 = vpop.f32.mrb[0].mxu0
    %v923 = vadd.f32 %v759, %v922
    %v924 = vpop.f32.mrb[0].mxu0
    %925 = vmatprep.mubr.f32.mxu0 0.0
    %926 = vmatmul.mubr.f32.gmra.mrb[0].mxu0 %v733
    %v927 = vpop.f32.mrb[0].mxu0
    %v928 = vadd.f32 %v759, %v927
    %v929 = vpop.f32.mrb[0].mxu0
    %930 = vmatprep.mubr.f32.mxu0 0.0
    %931 = vmatmul.mubr.f32.gmra.mrb[0].mxu0 %v734
    %v932 = vpop.f32.mrb[0].mxu0
    %v933 = vadd.f32 %v759, %v932
    %v934 = vpop.f32.mrb[0].mxu0
    %935 = vmatprep.mubr.f32.mxu0 0.0
    %936 = vmatmul.mubr.f32.gmra.mrb[0].mxu0 %v735
    %v937 = vpop.f32.mrb[0].mxu0
    %v938 = vadd.f32 %v759, %v937
    %v939 = vpop.f32.mrb[0].mxu0
    %940 = vmatprep.mubr.f32.mxu0 0.0
    %941 = vmatmul.mubr.f32.gmra.mrb[0].mxu0 %v736
    %v942 = vpop.f32.mrb[0].mxu0
    %v943 = vadd.f32 %v759, %v942
    %v944 = vpop.f32.mrb[0].mxu0
    %945 = vmatprep.mubr.f32.mxu0 0.0
    %946 = vmatmul.mubr.f32.gmra.mrb[0].mxu0 %v737
    %v947 = vpop.f32.mrb[0].mxu0
    %v948 = vadd.f32 %v759, %v947
    %v949 = vpop.f32.mrb[0].mxu0
    %950 = vdwg.mxu0
    %vm951 = vcmp.gt.f32.partialorder %v828, 0.0
    %vm952 = vcmp.gt.f32.partialorder %v833, 0.0
    %vm953 = vcmp.gt.f32.partialorder %v838, 0.0
    %vm954 = vcmp.gt.f32.partialorder %v843, 0.0
    %vm955 = vcmp.gt.f32.partialorder %v848, 0.0
    %vm956 = vcmp.gt.f32.partialorder %v853, 0.0
    %vm957 = vcmp.gt.f32.partialorder %v858, 0.0
    %vm958 = vcmp.gt.f32.partialorder %v863, 0.0
    %vm959 = vcmp.gt.f32.partialorder %v868, 0.0
    %vm960 = vcmp.gt.f32.partialorder %v873, 0.0
    %vm961 = vcmp.gt.f32.partialorder %v878, 0.0
    %vm962 = vcmp.gt.f32.partialorder %v883, 0.0
    %vm963 = vcmp.gt.f32.partialorder %v888, 0.0
    %vm964 = vcmp.gt.f32.partialorder %v893, 0.0
    %vm965 = vcmp.gt.f32.partialorder %v898, 0.0
    %vm966 = vcmp.gt.f32.partialorder %v903, 0.0
    %vm967 = vcmp.gt.f32.partialorder %v908, 0.0
    %vm968 = vcmp.gt.f32.partialorder %v913, 0.0
    %vm969 = vcmp.gt.f32.partialorder %v918, 0.0
    %vm970 = vcmp.gt.f32.partialorder %v923, 0.0
    %vm971 = vcmp.gt.f32.partialorder %v928, 0.0
    %vm972 = vcmp.gt.f32.partialorder %v933, 0.0
    %vm973 = vcmp.gt.f32.partialorder %v938, 0.0
    %vm974 = vcmp.gt.f32.partialorder %v943, 0.0
    %vm975 = vcmp.gt.f32.partialorder %v948, 0.0
    %v976 = vmul.f32 %v828, 0.2
    %v977 = vmul.f32 %v833, 0.2
    %v978 = vmul.f32 %v838, 0.2
    %v979 = vmul.f32 %v843, 0.2
    %v980 = vmul.f32 %v848, 0.2
    %v981 = vmul.f32 %v853, 0.2
    %v982 = vmul.f32 %v858, 0.2
    %v983 = vmul.f32 %v863, 0.2
    %v984 = vmul.f32 %v868, 0.2
    %v985 = vmul.f32 %v873, 0.2
    %v986 = vmul.f32 %v878, 0.2
    %v987 = vmul.f32 %v883, 0.2
    %v988 = vmul.f32 %v888, 0.2
    %v989 = vmul.f32 %v893, 0.2
    %v990 = vmul.f32 %v898, 0.2
    %v991 = vmul.f32 %v903, 0.2
    %v992 = vmul.f32 %v908, 0.2
    %v993 = vmul.f32 %v913, 0.2
    %v994 = vmul.f32 %v918, 0.2
    %v995 = vmul.f32 %v923, 0.2
    %v996 = vmul.f32 %v928, 0.2
    %v997 = vmul.f32 %v933, 0.2
    %v998 = vmul.f32 %v938, 0.2
    %v999 = vmul.f32 %v943, 0.2
    %v1000 = vmul.f32 %v948, 0.2
    %v1001 = vsel %vm951, %v828, %v976
    %v1002 = vsel %vm952, %v833, %v977
    %v1003 = vsel %vm953, %v838, %v978
    %v1004 = vsel %vm954, %v843, %v979
    %v1005 = vsel %vm955, %v848, %v980
    %v1006 = vsel %vm956, %v853, %v981
    %v1007 = vsel %vm957, %v858, %v982
    %v1008 = vsel %vm958, %v863, %v983
    %v1009 = vsel %vm959, %v868, %v984
    %v1010 = vsel %vm960, %v873, %v985
    %v1011 = vsel %vm961, %v878, %v986
    %v1012 = vsel %vm962, %v883, %v987
    %v1013 = vsel %vm963, %v888, %v988
    %v1014 = vsel %vm964, %v893, %v989
    %v1015 = vsel %vm965, %v898, %v990
    %v1016 = vsel %vm966, %v903, %v991
    %v1017 = vsel %vm967, %v908, %v992
    %v1018 = vsel %vm968, %v913, %v993
    %v1019 = vsel %vm969, %v918, %v994
    %v1020 = vsel %vm970, %v923, %v995
    %v1021 = vsel %vm971, %v928, %v996
    %v1022 = vsel %vm972, %v933, %v997
    %v1023 = vsel %vm973, %v938, %v998
    %v1024 = vsel %vm974, %v943, %v999
    %v1025 = vsel %vm975, %v948, %v1000
    %v1026 = vld [vmem:[%s8] sm:$0x1]
    %v1027 = vld [vmem:[#allocation4] sm:$0x1]
    %1029 = vset.pattern.permute.xlu0 0
    %1030 = vperm.xlu0 %1029, %v1027
    %v1031 = vpop.permute.xlu0 %1030
    %v1033 = vlaneseq
    %v1034 = vshrl.u32 %v1033, 7
    %v1035 = vsub.s32 0, %v1034
    %v1036 = vrot.slane %v1031, %v1035
    %1037 = vmatprep.subr.mxu0 0.0
    %1038 = vmatpush1.xpose.msra.mxu0 %v1001
    %1039 = vmatprep.subr.mxu0 0.0
    %1040 = vmatpush1.xpose.msra.mxu0 %v1002
    %1041 = vmatprep.subr.mxu0 0.0
    %1042 = vmatpush1.xpose.msra.mxu0 %v1003
    %1043 = vmatprep.subr.mxu0 0.0
    %1044 = vmatpush1.xpose.msra.mxu0 %v1004
    %1045 = vmatprep.subr.mxu0 0.0
    %1046 = vmatpush1.xpose.msra.mxu0 %v1005
    %1047 = vmatprep.subr.mxu0 0.0
    %1048 = vmatpush1.xpose.msra.mxu0 %v1006
    %1049 = vmatprep.subr.mxu0 0.0
    %1050 = vmatpush1.xpose.msra.mxu0 %v1007
    %1051 = vmatprep.subr.mxu0 0.0
    %1052 = vmatpush1.xpose.msra.mxu0 %v1008
    %1053 = vmatprep.subr.mxu0 0.0
    %1054 = vmatpush1.xpose.msra.mxu0 %v1009
    %1055 = vmatprep.subr.mxu0 0.0
    %1056 = vmatpush1.xpose.msra.mxu0 %v1010
    %1057 = vmatprep.subr.mxu0 0.0
    %1058 = vmatpush1.xpose.msra.mxu0 %v1011
    %1059 = vmatprep.subr.mxu0 0.0
    %1060 = vmatpush1.xpose.msra.mxu0 %v1012
    %1061 = vmatprep.subr.mxu0 0.0
    %1062 = vmatpush1.xpose.msra.mxu0 %v1013
    %1063 = vmatprep.subr.mxu0 0.0
    %1064 = vmatpush1.xpose.msra.mxu0 %v1014
    %1065 = vmatprep.subr.mxu0 0.0
    %1066 = vmatpush1.xpose.msra.mxu0 %v1015
    %1067 = vmatprep.subr.mxu0 0.0
    %1068 = vmatpush1.xpose.msra.mxu0 %v1016
    %1069 = vmatprep.subr.mxu0 0.0
    %1070 = vmatpush1.xpose.msra.mxu0 %v1017
    %1071 = vmatprep.subr.mxu0 0.0
    %1072 = vmatpush1.xpose.msra.mxu0 %v1018
    %1073 = vmatprep.subr.mxu0 0.0
    %1074 = vmatpush1.xpose.msra.mxu0 %v1019
    %1075 = vmatprep.subr.mxu0 0.0
    %1076 = vmatpush1.xpose.msra.mxu0 %v1020
    %1077 = vmatprep.subr.mxu0 0.0
    %1078 = vmatpush1.xpose.msra.mxu0 %v1021
    %1079 = vmatprep.subr.mxu0 0.0
    %1080 = vmatpush1.xpose.msra.mxu0 %v1022
    %1081 = vmatprep.subr.mxu0 0.0
    %1082 = vmatpush1.xpose.msra.mxu0 %v1023
    %1083 = vmatprep.subr.mxu0 0.0
    %1084 = vmatpush1.xpose.msra.mxu0 %v1024
    %1085 = vmatprep.subr.mxu0 0.0
    %1086 = vmatpush1.xpose.msra.mxu0 %v1025
    %1087 = vmatprep.subr.mxu0 0.0
    %1088 = vmatpush1.xpose.msra.mxu0 0.0
    %1089 = vmatprep.subr.mxu0 0.0
    %1090 = vmatpush1.xpose.msra.mxu0 0.0
    %1091 = vmatprep.subr.mxu0 0.0
    %1092 = vmatpush1.xpose.msra.mxu0 0.0
    %1093 = vmatprep.subr.mxu0 0.0
    %1094 = vmatpush1.xpose.msra.mxu0 0.0
    %1095 = vmatprep.subr.mxu0 0.0
    %1096 = vmatpush1.xpose.msra.mxu0 0.0
    %1097 = vmatprep.subr.mxu0 0.0
    %1098 = vmatpush1.xpose.msra.mxu0 0.0
    %1099 = vmatprep.subr.mxu0 0.0
    %1100 = vmatpush1.xpose.msra.mxu0 0.0
    %1101 = vmatprep.mubr.f32.mxu0 0.0
    %1102 = vmatmul.mubr.f32.gmra.mrb[0].mxu0 %v1026
    %v1103 = vpop.f32.mrb[0].mxu0
    %v1104 = vadd.f32 %v1036, %v1103
    %v1105 = vpop.f32.mrb[0].mxu0
    %v1106 = vadd.f32 %v1036, %v1105
    %1107 = vdwg.mxu0
    %v1110 = vcombine.low %v1104, %v1106
    %v1112 = vunpack.c.l.s4 1966171168
    %v1113 = vunpack.c.0.s8 %v1112
    %v1114 = vlaneseq
    %v1115 = vshrl.u32 %v1114, 7
    %v1116 = vsub.s32 %v1113, %v1115
    %v1117 = vrot.slane %v1110, %v1116
    %v1119 = vunpack.c.l.s4 1966171168
    %v1120 = vunpack.c.0.s8 %v1119
    %v1121 = vlaneseq
    %v1122 = vshrl.u32 %v1121, 7
    %v1123 = vsub.s32 %v1120, %v1122
    %v1124 = vrot.slane %v1117, %v1123
    %v1126 = vlaneseq
    %vm1127 = vcmp.ge.s32.totalorder %v1126, 0
    %vm1128 = vcmp.lt.s32.totalorder %v1126, 200
    %vm1129 = vmand %vm1127, %vm1128
    %1130 = vst.msk [vmem:[#allocation5] sm:$0x3] %vm1129, %v1124
    // Predicated region
    $region38: #{tpu_custom_call.1} parent=1 // pred_check
      _
    $region39: #{tpu_custom_call.1} parent=1 // pred_check_branch
      %1132 = sbr.rel (0) target = $region41
    $region40: #{tpu_custom_call.1} parent=1 // pred_region
      %s1134 = ssub.s32 32, 32
      %1135 = vsyncadd [#allocation6], %s1134
      %s1137 = sshll.u32 [#allocation5], 4
      %s1138 = int_to_ptr.vmem [resolvable:$true] %s1137
      %1140 = dma.vmem_to_hbm [thread:$0]  %s1138, 32, %s10, [#allocation6]
    $region41: #{tpu_custom_call.1} parent=1 // pred_fallthru
      _
    // Predicated region
    $region42: #{tpu_custom_call.1} parent=1 // pred_check
      _
    $region43: #{tpu_custom_call.1} parent=1 // pred_check_branch
      %1142 = sbr.rel (0) target = $region45
    $region44: #{tpu_custom_call.1} parent=1 // pred_region
      %1143 = dma.done [#allocation6], 32
    $region45: #{tpu_custom_call.1} parent=1 // pred_fallthru
      _
    %1144 = vsyncpa [#allocation6], 1

</llo_original>
